<compile_context>
chip_gen: v6e
topology: v6e:2x2x1
jax: 0.10.0
libtpu: 0.0.40
codegen_flags: <defaults>
</compile_context>

<pallas_src>
import jax
import jax.numpy as jnp
from jax.experimental import pallas as pl
from jax.experimental.pallas import tpu as pltpu


def _identity_kernel(x_ref, o_ref):
    # torch.pow(x, 1.0) is exactly the identity: plain vld/vst copy,
    # bit-exact for all inputs (including negatives), no EUP usage.
    o_ref[...] = x_ref[...]


_MAX_BLOCK_ROWS = 1024          # (1024, 1024) f32 block = 4 MiB per buffer
_LANE_CHOICES = (1024, 512, 256, 128)   # lane-dense last-dim candidates
_PAD_MULTIPLE = 8 * 128         # pad unaligned sizes up to a (sublane, lane) tile


def _choose_lane_dim(n):
    for lane in _LANE_CHOICES:
        if n % lane == 0:
            return lane
    return None


def _choose_block_rows(rows):
    """Block-row count that (a) keeps the block <= ~4 MiB at lane=1024,
    (b) is a multiple of 8 whenever it tiles (layout rule), and (c) yields a
    grid of >= 2 when possible so v7x's two TensorCores both get work."""
    if rows <= 8:
        return rows                                  # single whole-array block
    num_blocks = max(2, pl.cdiv(rows, _MAX_BLOCK_ROWS))
    block_rows = pl.cdiv(rows, num_blocks)
    block_rows = ((block_rows + 7) // 8) * 8         # round up to sublane multiple
    return min(block_rows, rows)


def _net1_forward_impl(x):
    n = x.size
    flat = x.reshape(-1)

    lane = _choose_lane_dim(n)
    if lane is None:
        # Unaligned total size: pad the flat view up to a multiple of 8*128 so
        # the same lane-dense tiled kernel applies, then slice the result back.
        pad = (-n) % _PAD_MULTIPLE
        flat = jnp.pad(flat, (0, pad))
        lane = _choose_lane_dim(flat.size)

    rows = flat.size // lane
    x2 = flat.reshape(rows, lane)                    # lane-dense 2-D view

    block_rows = _choose_block_rows(rows)
    grid = (pl.cdiv(rows, block_rows),)              # partial last block is masked

    y2 = pl.pallas_call(
        _identity_kernel,
        out_shape=jax.ShapeDtypeStruct((rows, lane), x.dtype),
        grid=grid,
        in_specs=[pl.BlockSpec((block_rows, lane), lambda i: (i, 0))],
        out_specs=pl.BlockSpec((block_rows, lane), lambda i: (i, 0)),
        compiler_params=pltpu.CompilerParams(
            dimension_semantics=("parallel",),
            vmem_limit_bytes=32 * 1024 * 1024,
        ),
    )(x2)

    y = y2.reshape(-1)
    if y.size != n:                                  # static at trace time
        y = y[:n]
    return y.reshape(x.shape)


# jit the wrapper so the reshapes / padding fuse around the kernel dispatch.
net1_forward = jax.jit(_net1_forward_impl)


if __name__ == "__main__":
    key = jax.random.PRNGKey(0)

    # Small NCHW input consistent with the module: batch=2, channels=4, 16x16.
    x = jax.random.normal(key, (2, 4, 16, 16), dtype=jnp.float32)
    y = net1_forward(x)
    jax.block_until_ready(y)
    assert y.shape == x.shape and y.dtype == x.dtype
    assert bool(jnp.array_equal(y, x))               # pow(x, 1.0) is bit-exact

    # Exercise the unaligned-size (pad + slice) path as well.
    x_odd = jax.random.normal(jax.random.PRNGKey(1), (3, 5, 7), dtype=jnp.float32)
    y_odd = net1_forward(x_odd)
    jax.block_until_ready(y_odd)
    assert y_odd.shape == x_odd.shape and y_odd.dtype == x_odd.dtype
    assert bool(jnp.array_equal(y_odd, x_odd))

    print("KERNEL_OK")
</pallas_src>

<mosaic_0001>
module attributes {stable_mosaic.version = 11 : i64} {
  func.func @_identity_kernel(%arg0: i32, %arg1: memref<2x1024xf32, #tpu.memory_space<vmem>>, %arg2: memref<2x1024xf32, #tpu.memory_space<vmem>>) attributes {dimension_semantics = [#tpu.dimension_semantics<parallel>], iteration_bounds = array<i64: 1>, scalar_prefetch = 0 : i64, scratch_operands = 0 : i64, tpu.core_type = #tpu.core_type<tc>, window_params = [{transform_indices = @transform_0, window_bounds = array<i64: 2, 1024>}, {transform_indices = @transform_1, window_bounds = array<i64: 2, 1024>}]} {
    %c0 = arith.constant 0 : index
    %c0_0 = arith.constant 0 : index
    %0 = vector.load %arg1[%c0, %c0_0] : memref<2x1024xf32, #tpu.memory_space<vmem>>, vector<2x1024xf32>
    %c0_1 = arith.constant 0 : index
    %c0_2 = arith.constant 0 : index
    %1 = vector.load %arg2[%c0_1, %c0_2] : memref<2x1024xf32, #tpu.memory_space<vmem>>, vector<2x1024xf32>
    tpu.vector_store %arg2[%c0_1, %c0_2], %0 {strides = array<i32>} : memref<2x1024xf32, #tpu.memory_space<vmem>>, vector<2x1024xf32>,
    return
  }
  func.func @transform_0(%arg0: i32) -> (i32, i32) {
    %c0_i32 = arith.constant 0 : i32
    %c0_i32_0 = arith.constant 0 : i32
    return %arg0, %c0_i32 : i32, i32
  }
  func.func @transform_1(%arg0: i32) -> (i32, i32) {
    %c0_i32 = arith.constant 0 : i32
    %c0_i32_0 = arith.constant 0 : i32
    return %arg0, %c0_i32 : i32, i32
  }
}

</mosaic_0001>

<llo_original>
// kernel: _net1_forward_impl.1
$region0: #{_net1_forward_impl.1}
  #allocation0 [shape = 'u32[]', space=smem, size = 0x4, offset = 0x4, fixed_abs, tag = 'smem constant byte address 0x4 - core index']
  #allocation1 [shape = 'u32[144,128]{1,0:T(1,128)}', space=vmem, size = 0x12000, scoped, tag = 'internal scratch']
  %s0 = inlined_call_operand.vmem [shape: f32[2,1024], index: 0, kind: input, shape index: {}]
  %s1 = inlined_call_operand.vmem [shape: f32[2,1024], index: 1, kind: output, shape index: {}]
  %s2 = sld [smem:[#allocation0]]
  $region14: #{_net1_forward_impl.1} parent=0
    _
  %s4 = ssub.s32 1, %s2
  %s5 = scalar_select 0, %s4, %s2
  // Predicated region
  $region2: #{_net1_forward_impl.1} parent=0 // pred_check
    _
  $region3: #{_net1_forward_impl.1} parent=0 // pred_check_branch
    %7 = sbr.rel (0) target = $region5
  $region4: #{_net1_forward_impl.1} parent=0 // pred_region
    _
  $region5: #{_net1_forward_impl.1} parent=0 // pred_fallthru
    _
  %v8 = vld [vmem:[%s0] sm:$0xff]
  %v9 = vld [vmem:[%s0 + $0x8] sm:$0xff]
  %10 = vst [vmem:[%s1] sm:$0xff] %v8
  %11 = vst [vmem:[%s1 + $0x8] sm:$0xff] %v9
  // Predicated region
  $region6: #{_net1_forward_impl.1} parent=0 // pred_check
    _
  $region7: #{_net1_forward_impl.1} parent=0 // pred_check_branch
    %13 = sbr.rel (0) target = $region9
  $region8: #{_net1_forward_impl.1} parent=0 // pred_region
    _
  $region9: #{_net1_forward_impl.1} parent=0 // pred_fallthru
    _
  // Predicated region
  $region10: #{_net1_forward_impl.1} parent=0 // pred_check
    _
  $region11: #{_net1_forward_impl.1} parent=0 // pred_check_branch
    %15 = sbr.rel (0) target = $region13
  $region12: #{_net1_forward_impl.1} parent=0 // pred_region
    _
  $region13: #{_net1_forward_impl.1} parent=0 // pred_fallthru
    _

</llo_original>
